<compile_context>
chip_gen: v7x
topology: tpu7x:2x2x1
jax: 0.10.0
libtpu: 0.0.40
codegen_flags: <defaults>
</compile_context>

<pallas_src>
import functools

import jax
import jax.numpy as jnp
from jax.experimental import pallas as pl
from jax.experimental.pallas import tpu as pltpu


def _round_up(x, m):
    return (x + m - 1) // m * m


def _vpu_supports_bf16():
    """bf16 VALU exists on v6e/v7x; keep f32 elementwise math on v5e/older."""
    try:
        kind = jax.devices()[0].device_kind.lower()
    except Exception:
        return False
    return ("v6" in kind) or ("v7" in kind)


def _pooled_features_kernel(x_ref, w1_ref, b1_ref, w2_ref, o_ref, acc_ref,
                            *, n_points, tile_n, n_tiles):
    t = pl.program_id(1)
    is_last = t == n_tiles - 1

    # Init running-max accumulator for this batch element.
    @pl.when(t == 0)
    def _init():
        acc_ref[...] = jnp.full(acc_ref.shape, -jnp.inf, dtype=acc_ref.dtype)

    x = x_ref[0]                       # (3, TN), channels-first
    w1 = w1_ref[...]                   # (64, 3)

    # conv1 (1x1, Cin=3): three broadcast FMAs + bias + ReLU on the VPU
    # (bf16 on v6e/v7x, f32 on v5e).  K=3 would waste MXU systolic depth.
    h1 = (w1[:, 0:1] * x[0:1, :]
          + w1[:, 1:2] * x[1:2, :]
          + w1[:, 2:3] * x[2:3, :]
          + b1_ref[...])               # (64, TN)
    h1 = jnp.maximum(h1, 0).astype(w2_ref.dtype)

    # conv2 (1x1, 64->128): MXU matmul, f32 accumulation.  Bias + ReLU are
    # deferred past the max-pool (applied in the wrapper on the pooled vector).
    h2 = jnp.dot(w2_ref[...], h1, preferred_element_type=jnp.float32)  # (128, TN)

    def _tile_max(vals):
        return jnp.maximum(acc_ref[...], jnp.max(vals, axis=1, keepdims=True))

    if n_points % tile_n != 0:
        # Only the last tile has padded lanes; only it pays the masking cost.
        @pl.when(t != n_tiles - 1)
        def _update_full():
            acc_ref[...] = _tile_max(h2)

        @pl.when(is_last)
        def _update_masked():
            lane = jax.lax.broadcasted_iota(jnp.int32, (1, tile_n), 1)
            valid = n_points - t * tile_n
            acc_ref[...] = _tile_max(jnp.where(lane < valid, h2, -jnp.inf))
    else:
        acc_ref[...] = _tile_max(h2)

    # Emit the pooled per-cloud feature vector once, on the last point tile.
    @pl.when(is_last)
    def _finalize():
        o_ref[0] = acc_ref[...].astype(o_ref.dtype)


def point_cloud_discriminator(x, params, *, tile_n=4096,
                              conv1_dtype=None, conv2_dtype=jnp.bfloat16):
    """x: (B, N, 3) float32 point clouds.  Returns (B, 1) float32 logits."""
    B, N, C = x.shape
    assert C == 3, f"expected 3 input channels, got {C}"
    w1, b1, w2, b2, w3, b3, w4, b4 = params

    if conv1_dtype is None:
        conv1_dtype = jnp.bfloat16 if _vpu_supports_bf16() else jnp.float32

    # Points tile: multiple of 128 (lane width), capped at the padded extent.
    # v7x note: keep tile_n <= ~8192 there (64 MiB VMEM/TC); on v5e/v6e it can
    # be raised (with vmem_limit_bytes) for very large clouds.
    tn = max(128, min(_round_up(tile_n, 128), _round_up(N, 128)))
    n_pad = _round_up(N, tn)
    n_tiles = n_pad // tn

    # Channels-first, lane-dense layout (matches the PyTorch transpose).
    x_cf = jnp.transpose(x, (0, 2, 1)).astype(conv1_dtype)     # (B, 3, N)
    if n_pad != N:
        x_cf = jnp.pad(x_cf, ((0, 0), (0, 0), (0, n_pad - N)))

    args = (
        x_cf,
        w1.astype(conv1_dtype), b1.reshape(-1, 1).astype(conv1_dtype),
        w2.astype(conv2_dtype),
    )

    def resident_spec(a):
        # Full-array block, constant index map -> loaded once, stays in VMEM.
        return pl.BlockSpec(a.shape, lambda b, t: (0,) * a.ndim)

    in_specs = ([pl.BlockSpec((1, 3, tn), lambda b, t: (b, 0, t))]
                + [resident_spec(a) for a in args[1:]])

    kernel = functools.partial(_pooled_features_kernel, n_points=N, tile_n=tn,
                               n_tiles=n_tiles)

    flops = 2 * B * N * (3 * 64 + 64 * 128)
    bytes_accessed = (x_cf.size * x_cf.dtype.itemsize
                      + sum(a.size * a.dtype.itemsize for a in args[1:])
                      + B * 128 * 4)

    pooled = pl.pallas_call(
        kernel,
        out_shape=jax.ShapeDtypeStruct((B, 128, 1), jnp.float32),
        grid_spec=pltpu.PrefetchScalarGridSpec(
            num_scalar_prefetch=0,
            grid=(B, n_tiles),                 # reduction (points) axis last
            in_specs=in_specs,
            out_specs=pl.BlockSpec((1, 128, 1), lambda b, t: (b, 0, 0)),
            scratch_shapes=[pltpu.VMEM((128, 1), jnp.float32)],
        ),
        compiler_params=pltpu.CompilerParams(
            dimension_semantics=("parallel", "arbitrary")),
        cost_estimate=pl.CostEstimate(flops=flops, transcendentals=0,
                                      bytes_accessed=bytes_accessed),
    )(*args)[:, :, 0]                          # (B, 128) raw max of conv2 dot

    # Deferred conv2 bias + ReLU, then the tiny fc head as batched XLA matmuls
    # (the former in-kernel 1-column matmuls were <1% MXU utilization).
    hp = jax.lax.Precision.HIGHEST
    feat = jax.nn.relu(pooled + b2)                              # (B, 128)
    h3 = jax.nn.relu(jnp.dot(feat, w3.T, precision=hp) + b3)     # (B, 64)
    return jnp.dot(h3, w4.T, precision=hp) + b4                  # (B, 1)


def init_params(key):
    """Deterministic synthetic parameters in PyTorch-native layouts.

    conv1.weight (64,3,1)  -> (64,3)    conv1.bias -> (64,)
    conv2.weight (128,64,1)-> (128,64)  conv2.bias -> (128,)
    fc1.weight   (64,128)               fc1.bias   -> (64,)
    fc2.weight   (1,64)                 fc2.bias   -> (1,)
    """
    ks = jax.random.split(key, 8)

    def u(k, shape, fan_in):
        bound = 1.0 / jnp.sqrt(fan_in)
        return jax.random.uniform(k, shape, jnp.float32, -bound, bound)

    w1 = u(ks[0], (64, 3), 3)
    b1 = u(ks[1], (64,), 3)
    w2 = u(ks[2], (128, 64), 64)
    b2 = u(ks[3], (128,), 64)
    w3 = u(ks[4], (64, 128), 128)
    b3 = u(ks[5], (64,), 128)
    w4 = u(ks[6], (1, 64), 64)
    b4 = u(ks[7], (1,), 64)
    return (w1, b1, w2, b2, w3, b3, w4, b4)


def reference_forward(x, params, *, conv1_dtype=jnp.float32,
                      conv2_dtype=jnp.bfloat16):
    """Pure-JAX reference mirroring the PyTorch forward with the same
    low-precision conv1/conv2 dtypes as the kernel."""
    hp = jax.lax.Precision.HIGHEST
    w1, b1, w2, b2, w3, b3, w4, b4 = params
    xd = x.astype(conv1_dtype)                         # (B, N, 3)
    w1d = w1.astype(conv1_dtype)
    b1d = b1.astype(conv1_dtype)
    h1 = (xd[..., 0:1] * w1d[:, 0]
          + xd[..., 1:2] * w1d[:, 1]
          + xd[..., 2:3] * w1d[:, 2] + b1d)            # (B, N, 64)
    h1 = jnp.maximum(h1, 0).astype(conv2_dtype)
    h2 = jnp.einsum('bno,po->bnp', h1, w2.astype(conv2_dtype),
                    preferred_element_type=jnp.float32)
    pooled = jnp.max(h2, axis=1)                       # (B, 128)
    # max(relu(a + b)) == relu(max(a) + b) per channel -> same as PyTorch.
    feat = jax.nn.relu(pooled + b2)
    h3 = jax.nn.relu(jnp.dot(feat, w3.T, precision=hp) + b3)
    return jnp.dot(h3, w4.T, precision=hp) + b4


if __name__ == "__main__":
    key = jax.random.PRNGKey(0)
    k_x, k_x2, k_p = jax.random.split(key, 3)
    params = init_params(k_p)
    conv1_dt = jnp.bfloat16 if _vpu_supports_bf16() else jnp.float32

    # Small test: B=2 clouds, 16 points, 3 coords (single tile + padding mask).
    B, N = 2, 16
    x = jax.random.normal(k_x, (B, N, 3), jnp.float32)
    out = jax.block_until_ready(point_cloud_discriminator(x, params))
    ref = reference_forward(x, params, conv1_dtype=conv1_dt)
    assert out.shape == (B, 1), out.shape
    assert jnp.allclose(out, ref, atol=2e-3, rtol=2e-3), (out, ref)

    # Multi-tile test: N=200 with TN=128 -> 2 point tiles, partial last tile
    # (exercises the running max + the last-tile-only padding mask).
    x2 = jax.random.normal(k_x2, (2, 200, 3), jnp.float32)
    out2 = jax.block_until_ready(
        point_cloud_discriminator(x2, params, tile_n=128))
    ref2 = reference_forward(x2, params, conv1_dtype=conv1_dt)
    assert out2.shape == (2, 1), out2.shape
    assert jnp.allclose(out2, ref2, atol=2e-3, rtol=2e-3), (out2, ref2)

    print("KERNEL_OK")
</pallas_src>

<mosaic_0001>
module attributes {stable_mosaic.version = 11 : i64} {
  func.func @_pooled_features_kernel(%arg0: i32, %arg1: i32, %arg2: memref<1x3x128xf32, #tpu.memory_space<vmem>>, %arg3: memref<64x3xf32, #tpu.memory_space<vmem>>, %arg4: memref<64x1xf32, #tpu.memory_space<vmem>>, %arg5: memref<128x64xbf16, #tpu.memory_space<vmem>>, %arg6: memref<1x128x1xf32, #tpu.memory_space<vmem>>, %arg7: memref<128x1xf32, #tpu.memory_space<vmem>>) attributes {dimension_semantics = [#tpu.dimension_semantics<parallel>, #tpu.dimension_semantics<arbitrary>], iteration_bounds = array<i64: 2, 1>, scalar_prefetch = 0 : i64, scratch_operands = 1 : i64, tpu.core_type = #tpu.core_type<tc>, window_params = [{transform_indices = @transform_0, window_bounds = array<i64: 1, 3, 128>}, {pipeline_mode = #tpu.pipeline_mode<synchronous>, transform_indices = @transform_1, window_bounds = array<i64: 64, 3>}, {pipeline_mode = #tpu.pipeline_mode<synchronous>, transform_indices = @transform_2, window_bounds = array<i64: 64, 1>}, {pipeline_mode = #tpu.pipeline_mode<synchronous>, transform_indices = @transform_3, window_bounds = array<i64: 128, 64>}, {transform_indices = @transform_4, window_bounds = array<i64: 1, 128, 1>}]} {
    %c0_i32 = arith.constant 0 : i32
    %0 = arith.cmpi eq, %arg1, %c0_i32 : i32
    %c0_i32_0 = arith.constant 0 : i32
    %1 = arith.cmpi eq, %arg1, %c0_i32_0 : i32
    %2 = arith.extui %1 : i1 to i32
    %c0_i32_1 = arith.constant 0 : i32
    %3 = arith.cmpi ne, %2, %c0_i32_1 : i32
    scf.if %3 {
      %cst_15 = arith.constant 0xFF800000 : f32
      %39 = vector.broadcast %cst_15 : f32 to vector<128x1xf32>
      %c0_16 = arith.constant 0 : index
      %c0_17 = arith.constant 0 : index
      %40 = vector.load %arg7[%c0_16, %c0_17] : memref<128x1xf32, #tpu.memory_space<vmem>>, vector<128x1xf32>
      tpu.vector_store %arg7[%c0_16, %c0_17], %39 {strides = array<i32>} : memref<128x1xf32, #tpu.memory_space<vmem>>, vector<128x1xf32>,
    } else {
    }
    %c0 = arith.constant 0 : index
    %c0_2 = arith.constant 0 : index
    %c0_3 = arith.constant 0 : index
    %4 = vector.load %arg2[%c0, %c0_2, %c0_3] : memref<1x3x128xf32, #tpu.memory_space<vmem>>, vector<1x3x128xf32>
    %5 = vector.shape_cast %4 : vector<1x3x128xf32> to vector<3x128xf32>
    %c0_4 = arith.constant 0 : index
    %c0_5 = arith.constant 0 : index
    %6 = vector.load %arg3[%c0_4, %c0_5] : memref<64x3xf32, #tpu.memory_space<vmem>>, vector<64x3xf32>
    %7 = vector.extract_strided_slice %6 {offsets = [0, 0], sizes = [64, 1], strides = [1, 1]} : vector<64x3xf32> to vector<64x1xf32>
    %8 = vector.extract_strided_slice %5 {offsets = [0, 0], sizes = [1, 128], strides = [1, 1]} : vector<3x128xf32> to vector<1x128xf32>
    %9 = vector.broadcast %7 : vector<64x1xf32> to vector<64x128xf32>
    %10 = vector.broadcast %8 : vector<1x128xf32> to vector<64x128xf32>
    %11 = arith.mulf %9, %10 : vector<64x128xf32>
    %12 = vector.extract_strided_slice %6 {offsets = [0, 1], sizes = [64, 1], strides = [1, 1]} : vector<64x3xf32> to vector<64x1xf32>
    %13 = vector.extract_strided_slice %5 {offsets = [1, 0], sizes = [1, 128], strides = [1, 1]} : vector<3x128xf32> to vector<1x128xf32>
    %14 = vector.broadcast %12 : vector<64x1xf32> to vector<64x128xf32>
    %15 = vector.broadcast %13 : vector<1x128xf32> to vector<64x128xf32>
    %16 = arith.mulf %14, %15 : vector<64x128xf32>
    %17 = arith.addf %11, %16 : vector<64x128xf32>
    %18 = vector.extract_strided_slice %6 {offsets = [0, 2], sizes = [64, 1], strides = [1, 1]} : vector<64x3xf32> to vector<64x1xf32>
    %19 = vector.extract_strided_slice %5 {offsets = [2, 0], sizes = [1, 128], strides = [1, 1]} : vector<3x128xf32> to vector<1x128xf32>
    %20 = vector.broadcast %18 : vector<64x1xf32> to vector<64x128xf32>
    %21 = vector.broadcast %19 : vector<1x128xf32> to vector<64x128xf32>
    %22 = arith.mulf %20, %21 : vector<64x128xf32>
    %23 = arith.addf %17, %22 : vector<64x128xf32>
    %c0_6 = arith.constant 0 : index
    %c0_7 = arith.constant 0 : index
    %24 = vector.load %arg4[%c0_6, %c0_7] : memref<64x1xf32, #tpu.memory_space<vmem>>, vector<64x1xf32>
    %25 = vector.broadcast %24 : vector<64x1xf32> to vector<64x128xf32>
    %26 = arith.addf %23, %25 : vector<64x128xf32>
    %cst = arith.constant 0.000000e+00 : f32
    %27 = vector.broadcast %cst : f32 to vector<64x128xf32>
    %28 = arith.maximumf %26, %27 : vector<64x128xf32>
    %29 = arith.truncf %28 : vector<64x128xf32> to vector<64x128xbf16>
    %c0_8 = arith.constant 0 : index
    %c0_9 = arith.constant 0 : index
    %30 = vector.load %arg5[%c0_8, %c0_9] : memref<128x64xbf16, #tpu.memory_space<vmem>>, vector<128x64xbf16>
    %cst_10 = arith.constant dense<0.000000e+00> : vector<128x128xf32>
    %31 = tpu.matmul %30, %29, %cst_10 {dimension_numbers = #tpu.dot_dimension_numbers<[1], [0], [0], [1], [0, 0, 1, 1], [], []>} : vector<128x64xbf16>, vector<64x128xbf16>, vector<128x128xf32> -> vector<128x128xf32>
    %c0_i32_11 = arith.constant 0 : i32
    %32 = arith.cmpi ne, %arg1, %c0_i32_11 : i32
    %33 = arith.extui %32 : i1 to i32
    %c0_i32_12 = arith.constant 0 : i32
    %34 = arith.cmpi ne, %33, %c0_i32_12 : i32
    scf.if %34 {
      %c0_15 = arith.constant 0 : index
      %c0_16 = arith.constant 0 : index
      %39 = vector.load %arg7[%c0_15, %c0_16] : memref<128x1xf32, #tpu.memory_space<vmem>>, vector<128x1xf32>
      %cst_17 = arith.constant dense<0xFF800000> : vector<128xf32>
      %40 = vector.multi_reduction <maximumf>, %31, %cst_17 [1] : vector<128x128xf32> to vector<128xf32>
      %41 = vector.shape_cast %40 : vector<128xf32> to vector<128x1xf32>
      %42 = arith.maximumf %39, %41 : vector<128x1xf32>
      %c0_18 = arith.constant 0 : index
      %c0_19 = arith.constant 0 : index
      %43 = vector.load %arg7[%c0_18, %c0_19] : memref<128x1xf32, #tpu.memory_space<vmem>>, vector<128x1xf32>
      tpu.vector_store %arg7[%c0_18, %c0_19], %42 {strides = array<i32>} : memref<128x1xf32, #tpu.memory_space<vmem>>, vector<128x1xf32>,
    } else {
    }
    %35 = arith.extui %0 : i1 to i32
    %c0_i32_13 = arith.constant 0 : i32
    %36 = arith.cmpi ne, %35, %c0_i32_13 : i32
    scf.if %36 {
      %39 = tpu.iota {dimensions = array<i32: 1>} : vector<1x128xi32>
      %c128_i32 = arith.constant 128 : i32
      %40 = arith.muli %arg1, %c128_i32 : i32
      %c16_i32 = arith.constant 16 : i32
      %41 = arith.subi %c16_i32, %40 : i32
      %42 = vector.broadcast %41 : i32 to vector<1x128xi32>
      %43 = arith.cmpi slt, %39, %42 : vector<1x128xi32>
      %cst_15 = arith.constant 0xFF800000 : f32
      %44 = vector.shape_cast %43 : vector<1x128xi1> to vector<1x128xi1>
      %45 = vector.broadcast %44 : vector<1x128xi1> to vector<128x128xi1>
      %46 = vector.broadcast %cst_15 : f32 to vector<128x128xf32>
      %47 = arith.select %45, %31, %46 : vector<128x128xi1>, vector<128x128xf32>
      %c0_16 = arith.constant 0 : index
      %c0_17 = arith.constant 0 : index
      %48 = vector.load %arg7[%c0_16, %c0_17] : memref<128x1xf32, #tpu.memory_space<vmem>>, vector<128x1xf32>
      %cst_18 = arith.constant dense<0xFF800000> : vector<128xf32>
      %49 = vector.multi_reduction <maximumf>, %47, %cst_18 [1] : vector<128x128xf32> to vector<128xf32>
      %50 = vector.shape_cast %49 : vector<128xf32> to vector<128x1xf32>
      %51 = arith.maximumf %48, %50 : vector<128x1xf32>
      %c0_19 = arith.constant 0 : index
      %c0_20 = arith.constant 0 : index
      %52 = vector.load %arg7[%c0_19, %c0_20] : memref<128x1xf32, #tpu.memory_space<vmem>>, vector<128x1xf32>
      tpu.vector_store %arg7[%c0_19, %c0_20], %51 {strides = array<i32>} : memref<128x1xf32, #tpu.memory_space<vmem>>, vector<128x1xf32>,
    } else {
    }
    %37 = arith.extui %0 : i1 to i32
    %c0_i32_14 = arith.constant 0 : i32
    %38 = arith.cmpi ne, %37, %c0_i32_14 : i32
    scf.if %38 {
      %c0_15 = arith.constant 0 : index
      %c0_16 = arith.constant 0 : index
      %39 = vector.load %arg7[%c0_15, %c0_16] : memref<128x1xf32, #tpu.memory_space<vmem>>, vector<128x1xf32>
      %c0_17 = arith.constant 0 : index
      %c0_18 = arith.constant 0 : index
      %c0_19 = arith.constant 0 : index
      %40 = vector.load %arg6[%c0_17, %c0_18, %c0_19] : memref<1x128x1xf32, #tpu.memory_space<vmem>>, vector<1x128x1xf32>
      %41 = vector.shape_cast %40 : vector<1x128x1xf32> to vector<128x1xf32>
      %42 = vector.shape_cast %39 : vector<128x1xf32> to vector<1x128x1xf32>
      tpu.vector_store %arg6[%c0_17, %c0_18, %c0_19], %42 {strides = array<i32>} : memref<1x128x1xf32, #tpu.memory_space<vmem>>, vector<1x128x1xf32>,
    } else {
    }
    return
  }
  func.func @transform_0(%arg0: i32, %arg1: i32) -> (i32, i32, i32) {
    %c0_i32 = arith.constant 0 : i32
    %c0_i32_0 = arith.constant 0 : i32
    return %arg0, %c0_i32, %arg1 : i32, i32, i32
  }
  func.func @transform_1(%arg0: i32, %arg1: i32) -> (i32, i32) {
    %c0_i32 = arith.constant 0 : i32
    %c0_i32_0 = arith.constant 0 : i32
    %c0_i32_1 = arith.constant 0 : i32
    return %c0_i32, %c0_i32_0 : i32, i32
  }
  func.func @transform_2(%arg0: i32, %arg1: i32) -> (i32, i32) {
    %c0_i32 = arith.constant 0 : i32
    %c0_i32_0 = arith.constant 0 : i32
    %c0_i32_1 = arith.constant 0 : i32
    return %c0_i32, %c0_i32_0 : i32, i32
  }
  func.func @transform_3(%arg0: i32, %arg1: i32) -> (i32, i32) {
    %c0_i32 = arith.constant 0 : i32
    %c0_i32_0 = arith.constant 0 : i32
    %c0_i32_1 = arith.constant 0 : i32
    return %c0_i32, %c0_i32_0 : i32, i32
  }
  func.func @transform_4(%arg0: i32, %arg1: i32) -> (i32, i32, i32) {
    %c0_i32 = arith.constant 0 : i32
    %c0_i32_0 = arith.constant 0 : i32
    %c0_i32_1 = arith.constant 0 : i32
    return %arg0, %c0_i32, %c0_i32_0 : i32, i32, i32
  }
}

</mosaic_0001>

<llo_original>
// kernel: tpu_custom_call.1
$region0: #{tpu_custom_call.1}
  #allocation0 [shape = 'u32[]', space=smem, size = 0x4, offset = 0x4, fixed_abs, tag = 'smem constant byte address 0x4 - core index']
  #allocation1 [shape = 'u32[144,128]{1,0:T(1,128)}', space=vmem, size = 0x12000, scoped, tag = 'internal scratch']
  #allocation2 [shape = 'f32[128,1]{1,0:T(8,128)}', space=vmem, size = 0x10000, scoped, tag = 'scratch operand']
  %s0 = inlined_call_operand.vmem [shape: f32[2,3,128], index: 0, kind: input, shape index: {}]
  %s1 = inlined_call_operand.vmem [shape: f32[64,3], index: 1, kind: input, shape index: {}]
  %s2 = inlined_call_operand.vmem [shape: f32[64,1], index: 2, kind: input, shape index: {}]
  %s3 = inlined_call_operand.vmem [shape: bf16[128,64], index: 3, kind: input, shape index: {}]
  %s4 = inlined_call_operand.vmem [shape: f32[2,128,1], index: 4, kind: output, shape index: {}]
  %s5 = sld [smem:[#allocation0]]
  $region61: #{tpu_custom_call.1} parent=0
    _
  %s7 = ssub.s32 1, %s5
  %s8 = scalar_select 0, %s7, %s5
  loop: start=0, step=1, limit=4
  $region2: #{tpu_custom_call.1} parent=0 // loop_pre_header
    _
  $region3: #{tpu_custom_call.1} parent=0 // loop_header
    %s10 = sphi 0, %s14
    %p11 = scmp.ge.s32.totalorder %s10, 4
    %s17 = sphi 0, %s29
    %s18 = sphi 0, %s25
    %s19 = sphi 0, %s17
    %s20 = sphi 0, %s18
    %s21 = sphi 0, %s19
    %s22 = sphi 0, %s20
    %s34 = sphi 0, %s36
    %s37 = sphi 0, %s34
    %s38 = sphi 0, %s37
    %s54 = sphi 0, %s38
    %s58 = sphi 0, %s58
    %s60 = sphi 0, %s58
    %s61 = sphi 0, %s60
    %s75 = sphi 0, %s61
    %s79 = sphi 0, %s79
    %s81 = sphi 0, %s79
    %s82 = sphi 0, %s81
    %s96 = sphi 0, %s82
    %s100 = sphi 0, %s100
    %s102 = sphi 0, %s100
    %s103 = sphi 0, %s102
    %s117 = sphi 0, %s103
    %s123 = sphi 0, %s125
    %s126 = sphi 0, %s123
    %s127 = sphi 0, %s126
    %s143 = sphi 0, %s127
  $region4: #{tpu_custom_call.1} parent=0 // loop_header_branch
    %13 = sbr.rel (%p11) target = $region8
  $region5: #{tpu_custom_call.1} parent=0 // loop_body
    %s15 = ssub.s32 %s10, 1
    %s16 = ssub.s32 %s10, 2
    %s23 = sadd.s32 1, %s18
    %p24 = scmp.ge.s32.totalorder %s23, 1
    %s25 = scalar_select %p24, 0, %s23
    %s26 = sadd.s32 1, %s17
    %s27 = scalar_select %p24, %s26, %s17
    %p28 = scmp.ge.s32.totalorder %s27, 2
    %s29 = scalar_select %p28, 0, %s27
    %s30 = ssub.s32 %s17, %s29
    %s31 = ssub.s32 %s18, %s25
    %s32 = sor.u32 %s30, %s31
    %p33 = scmp.eq.s32.totalorder %s32, 0
    %s35 = sadd.s32 %s34, 1
    %s36 = scalar_select %p33, %s34, %s35
    %p39 = pneg %p33
    %p40 = scmp.eq.s32.totalorder %s10, 1
    %p41 = por %p39, %p40
    %p42 = scmp.ne.s32.totalorder %s34, %s37
    %p43 = scmp.eq.s32.totalorder %s10, 0
    %p44 = por %p42, %p43
    %p45 = scmp.ne.s32.totalorder %s34, %s37
    %p46 = scmp.eq.s32.totalorder %s15, 1
    %p47 = por %p45, %p46
    %p48 = scmp.ne.s32.totalorder %s37, %s38
    %p49 = scmp.eq.s32.totalorder %s15, 0
    %p50 = por %p48, %p49
    %p51 = scmp.ne.s32.totalorder %s37, %s38
    %p52 = scmp.eq.s32.totalorder %s16, 1
    %p53 = por %p51, %p52
    %p55 = scmp.ne.s32.totalorder %s38, %s54
    %p56 = scmp.eq.s32.totalorder %s16, 0
    %p57 = por %p55, %p56
    %s59 = sadd.s32 %s58, 1
    %p62 = scmp.eq.s32.totalorder %s10, 1
    %p63 = scmp.ne.s32.totalorder %s58, %s60
    %p64 = scmp.eq.s32.totalorder %s10, 0
    %p65 = por %p63, %p64
    %p66 = scmp.ne.s32.totalorder %s58, %s60
    %p67 = scmp.eq.s32.totalorder %s15, 1
    %p68 = por %p66, %p67
    %p69 = scmp.ne.s32.totalorder %s60, %s61
    %p70 = scmp.eq.s32.totalorder %s15, 0
    %p71 = por %p69, %p70
    %p72 = scmp.ne.s32.totalorder %s60, %s61
    %p73 = scmp.eq.s32.totalorder %s16, 1
    %p74 = por %p72, %p73
    %p76 = scmp.ne.s32.totalorder %s61, %s75
    %p77 = scmp.eq.s32.totalorder %s16, 0
    %p78 = por %p76, %p77
    %s80 = sadd.s32 %s79, 1
    %p83 = scmp.eq.s32.totalorder %s10, 1
    %p84 = scmp.ne.s32.totalorder %s79, %s81
    %p85 = scmp.eq.s32.totalorder %s10, 0
    %p86 = por %p84, %p85
    %p87 = scmp.ne.s32.totalorder %s79, %s81
    %p88 = scmp.eq.s32.totalorder %s15, 1
    %p89 = por %p87, %p88
    %p90 = scmp.ne.s32.totalorder %s81, %s82
    %p91 = scmp.eq.s32.totalorder %s15, 0
    %p92 = por %p90, %p91
    %p93 = scmp.ne.s32.totalorder %s81, %s82
    %p94 = scmp.eq.s32.totalorder %s16, 1
    %p95 = por %p93, %p94
    %p97 = scmp.ne.s32.totalorder %s82, %s96
    %p98 = scmp.eq.s32.totalorder %s16, 0
    %p99 = por %p97, %p98
    %s101 = sadd.s32 %s100, 1
    %p104 = scmp.eq.s32.totalorder %s10, 1
    %p105 = scmp.ne.s32.totalorder %s100, %s102
    %p106 = scmp.eq.s32.totalorder %s10, 0
    %p107 = por %p105, %p106
    %p108 = scmp.ne.s32.totalorder %s100, %s102
    %p109 = scmp.eq.s32.totalorder %s15, 1
    %p110 = por %p108, %p109
    %p111 = scmp.ne.s32.totalorder %s102, %s103
    %p112 = scmp.eq.s32.totalorder %s15, 0
    %p113 = por %p111, %p112
    %p114 = scmp.ne.s32.totalorder %s102, %s103
    %p115 = scmp.eq.s32.totalorder %s16, 1
    %p116 = por %p114, %p115
    %p118 = scmp.ne.s32.totalorder %s103, %s117
    %p119 = scmp.eq.s32.totalorder %s16, 0
    %p120 = por %p118, %p119
    %s121 = ssub.s32 %s17, %s29
    %p122 = scmp.eq.s32.totalorder %s121, 0
    %s124 = sadd.s32 %s123, 1
    %s125 = scalar_select %p122, %s123, %s124
    %p128 = pneg %p122
    %p129 = scmp.eq.s32.totalorder %s10, 1
    %p130 = por %p128, %p129
    %p131 = scmp.ne.s32.totalorder %s123, %s126
    %p132 = scmp.eq.s32.totalorder %s10, 0
    %p133 = por %p131, %p132
    %p134 = scmp.ne.s32.totalorder %s123, %s126
    %p135 = scmp.eq.s32.totalorder %s15, 1
    %p136 = por %p134, %p135
    %p137 = scmp.ne.s32.totalorder %s126, %s127
    %p138 = scmp.eq.s32.totalorder %s15, 0
    %p139 = por %p137, %p138
    %p140 = scmp.ne.s32.totalorder %s126, %s127
    %p141 = scmp.eq.s32.totalorder %s16, 1
    %p142 = por %p140, %p141
    %p144 = scmp.ne.s32.totalorder %s127, %s143
    %p145 = scmp.eq.s32.totalorder %s16, 0
    %p146 = por %p144, %p145
    %p147 = scmp.le.s32.totalorder 1, %s10
    %p148 = scmp.lt.s32.totalorder %s10, 3
    %p149 = pnand %p147, %p148
    %p150 = pneg %p149
    // Predicated region
    $region9: #{tpu_custom_call.1} parent=5 // pred_check
      _
    $region10: #{tpu_custom_call.1} parent=5 // pred_check_branch
      %152 = sbr.rel (%p149) target = $region12
    $region11: #{tpu_custom_call.1} parent=5 // pred_region
      %s153 = ssub.s32 %s10, 1
      // Predicated region
      $region13: #{tpu_custom_call.1} parent=11 // pred_check
        %p154 = pneg %p71
      $region14: #{tpu_custom_call.1} parent=11 // pred_check_branch
        %156 = sbr.rel (%p154) target = $region16
      $region15: #{tpu_custom_call.1} parent=11 // pred_region
        _
      $region16: #{tpu_custom_call.1} parent=11 // pred_fallthru
        _
      // Predicated region
      $region17: #{tpu_custom_call.1} parent=11 // pred_check
        %p157 = pneg %p92
      $region18: #{tpu_custom_call.1} parent=11 // pred_check_branch
        %159 = sbr.rel (%p157) target = $region20
      $region19: #{tpu_custom_call.1} parent=11 // pred_region
        _
      $region20: #{tpu_custom_call.1} parent=11 // pred_fallthru
        _
      // Predicated region
      $region21: #{tpu_custom_call.1} parent=11 // pred_check
        %p160 = pneg %p113
      $region22: #{tpu_custom_call.1} parent=11 // pred_check_branch
        %162 = sbr.rel (%p160) target = $region24
      $region23: #{tpu_custom_call.1} parent=11 // pred_region
        _
      $region24: #{tpu_custom_call.1} parent=11 // pred_fallthru
        _
    $region12: #{tpu_custom_call.1} parent=5 // pred_fallthru
      _
    %p163 = scmp.lt.s32.totalorder %s10, 2
    // Predicated region
    $region25: #{tpu_custom_call.1} parent=5 // pred_check
      %p164 = pneg %p163
    $region26: #{tpu_custom_call.1} parent=5 // pred_check_branch
      %166 = sbr.rel (%p164) target = $region28
    $region27: #{tpu_custom_call.1} parent=5 // pred_region
      // Predicated region
      $region29: #{tpu_custom_call.1} parent=27 // pred_check
        %p167 = pneg %p44
      $region30: #{tpu_custom_call.1} parent=27 // pred_check_branch
        %169 = sbr.rel (%p167) target = $region32
      $region31: #{tpu_custom_call.1} parent=27 // pred_region
        %p170 = scmp.lt.s32.totalorder %s17, 1
        %s171 = scalar_select %p170, %s17, 1
        %p172 = scmp.lt.s32.totalorder %s18, 0
        %s173 = scalar_select %p172, %s18, 0
        %s174 = sadd.s32 %s173, %s171
        %s175 = smul.addr %s174, 4
        %s176 = scalar_lea.vmem %s0, %s175
      $region32: #{tpu_custom_call.1} parent=27 // pred_fallthru
        _
    $region28: #{tpu_custom_call.1} parent=5 // pred_fallthru
      _
    %p177 = scmp.le.s32.totalorder 1, %s10
    %p178 = scmp.lt.s32.totalorder %s10, 3
    %p179 = pnand %p177, %p178
    %p180 = pneg %p179
    // Predicated region
    $region33: #{tpu_custom_call.1} parent=5 // pred_check
      _
    $region34: #{tpu_custom_call.1} parent=5 // pred_check_branch
      %182 = sbr.rel (%p179) target = $region36
    $region35: #{tpu_custom_call.1} parent=5 // pred_region
      %s183 = ssub.s32 %s10, 1
      %p184 = scmp.lt.s32.totalorder %s19, 1
      %s185 = scalar_select %p184, %s19, 1
      %p186 = scmp.lt.s32.totalorder %s20, 0
      %s187 = scalar_select %p186, %s20, 0
      %s188 = sadd.s32 %s187, %s185
      %s189 = smul.addr %s188, 4
      %s190 = scalar_lea.vmem %s0, %s189
      %p191 = pneg %p50
      %p192 = pneg %p47
      %p193 = pneg %p71
      %p194 = pneg %p68
      %p195 = pneg %p92
      %p196 = pneg %p89
      %p197 = pneg %p113
      %p198 = pneg %p110
      %p199 = pneg %p139
      %p200 = pneg %p136
      %p201 = scmp.lt.s32.totalorder %s19, 1
      %s202 = scalar_select %p201, %s19, 1
      %s203 = smul.addr %s202, 16
      %s204 = smul.addr %s203, 8
      %s205 = scalar_lea.vmem %s4, %s204
      %p206 = scmp.lt.s32.totalorder %s19, 1
      %s207 = scalar_select %p206, %s19, 1
      %p208 = scmp.lt.s32.totalorder %s20, 0
      %s209 = scalar_select %p208, %s20, 0
      %s210 = sadd.s32 %s209, %s207
      %s211 = smul.addr %s210, 4
      %s212 = scalar_lea.vmem %s0, %s211
      %p213 = scmp.lt.s32.totalorder %s19, 1
      %s214 = scalar_select %p213, %s19, 1
      %s215 = smul.addr %s214, 16
      %s216 = smul.addr %s215, 8
      %s217 = scalar_lea.vmem %s4, %s216
      %p219 = scmp.eq.s32.totalorder %s20, 0
      // Predicated region
      $region37: #{tpu_custom_call.1} parent=35 // pred_check
        %p220 = pneg %p219
      $region38: #{tpu_custom_call.1} parent=35 // pred_check_branch
        %222 = sbr.rel (%p220) target = $region40
      $region39: #{tpu_custom_call.1} parent=35 // pred_region
        %vm223 = vcmask 7168
        %224 = vst.msk [vmem:[#allocation2] sm:$0xff] %vm223, -inf
        %225 = vst.msk [vmem:[#allocation2 + $0x8] sm:$0xff] %vm223, -inf
        %226 = vst.msk [vmem:[#allocation2 + $0x10] sm:$0xff] %vm223, -inf
        %227 = vst.msk [vmem:[#allocation2 + $0x18] sm:$0xff] %vm223, -inf
        %228 = vst.msk [vmem:[#allocation2 + $0x20] sm:$0xff] %vm223, -inf
        %229 = vst.msk [vmem:[#allocation2 + $0x28] sm:$0xff] %vm223, -inf
        %230 = vst.msk [vmem:[#allocation2 + $0x30] sm:$0xff] %vm223, -inf
        %231 = vst.msk [vmem:[#allocation2 + $0x38] sm:$0xff] %vm223, -inf
        %232 = vst.msk [vmem:[#allocation2 + $0x40] sm:$0xff] %vm223, -inf
        %233 = vst.msk [vmem:[#allocation2 + $0x48] sm:$0xff] %vm223, -inf
        %234 = vst.msk [vmem:[#allocation2 + $0x50] sm:$0xff] %vm223, -inf
        %235 = vst.msk [vmem:[#allocation2 + $0x58] sm:$0xff] %vm223, -inf
        %236 = vst.msk [vmem:[#allocation2 + $0x60] sm:$0xff] %vm223, -inf
        %237 = vst.msk [vmem:[#allocation2 + $0x68] sm:$0xff] %vm223, -inf
        %238 = vst.msk [vmem:[#allocation2 + $0x70] sm:$0xff] %vm223, -inf
        %239 = vst.msk [vmem:[#allocation2 + $0x78] sm:$0xff] %vm223, -inf
      $region40: #{tpu_custom_call.1} parent=35 // pred_fallthru
        _
      %v240 = vld [vmem:[%s212] sm:$0x7]
      %v241 = vld [vmem:[%s1] sm:$0xff]
      %v242 = vld [vmem:[%s1 + $0x8] sm:$0xff]
      %v243 = vld [vmem:[%s1 + $0x10] sm:$0xff]
      %v244 = vld [vmem:[%s1 + $0x18] sm:$0xff]
      %v245 = vld [vmem:[%s1 + $0x20] sm:$0xff]
      %v246 = vld [vmem:[%s1 + $0x28] sm:$0xff]
      %v247 = vld [vmem:[%s1 + $0x30] sm:$0xff]
      %v248 = vld [vmem:[%s1 + $0x38] sm:$0xff]
      %250 = vset.pattern.permute.xlu0 0
      %251 = vperm.xlu0 %250, %v241
      %v252 = vpop.permute.xlu0 %251
      %255 = vset.pattern.permute.xlu0 0
      %256 = vperm.xlu0 %255, %v242
      %v257 = vpop.permute.xlu0 %256
      %260 = vset.pattern.permute.xlu0 0
      %261 = vperm.xlu0 %260, %v243
      %v262 = vpop.permute.xlu0 %261
      %265 = vset.pattern.permute.xlu0 0
      %266 = vperm.xlu0 %265, %v244
      %v267 = vpop.permute.xlu0 %266
      %270 = vset.pattern.permute.xlu0 0
      %271 = vperm.xlu0 %270, %v245
      %v272 = vpop.permute.xlu0 %271
      %275 = vset.pattern.permute.xlu0 0
      %276 = vperm.xlu0 %275, %v246
      %v277 = vpop.permute.xlu0 %276
      %280 = vset.pattern.permute.xlu0 0
      %281 = vperm.xlu0 %280, %v247
      %v282 = vpop.permute.xlu0 %281
      %285 = vset.pattern.permute.xlu0 0
      %286 = vperm.xlu0 %285, %v248
      %v287 = vpop.permute.xlu0 %286
      %v289 = vlaneseq
      %v290 = vshrl.u32 %v289, 7
      %v291 = vsub.s32 0, %v290
      %v292 = vrot.slane %v240, %v291
      %v293 = vmul.f32 %v252, %v292
      %v294 = vmul.f32 %v257, %v292
      %v295 = vmul.f32 %v262, %v292
      %v296 = vmul.f32 %v267, %v292
      %v297 = vmul.f32 %v272, %v292
      %v298 = vmul.f32 %v277, %v292
      %v299 = vmul.f32 %v282, %v292
      %v300 = vmul.f32 %v287, %v292
      %301 = vset.pattern.permute.xlu0 1
      %302 = vperm.xlu0 %301, %v241
      %v303 = vpop.permute.xlu0 %302
      %305 = vset.pattern.permute.xlu0 1
      %306 = vperm.xlu0 %305, %v242
      %v307 = vpop.permute.xlu0 %306
      %309 = vset.pattern.permute.xlu0 1
      %310 = vperm.xlu0 %309, %v243
      %v311 = vpop.permute.xlu0 %310
      %313 = vset.pattern.permute.xlu0 1
      %314 = vperm.xlu0 %313, %v244
      %v315 = vpop.permute.xlu0 %314
      %317 = vset.pattern.permute.xlu0 1
      %318 = vperm.xlu0 %317, %v245
      %v319 = vpop.permute.xlu0 %318
      %321 = vset.pattern.permute.xlu0 1
      %322 = vperm.xlu0 %321, %v246
      %v323 = vpop.permute.xlu0 %322
      %325 = vset.pattern.permute.xlu0 1
      %326 = vperm.xlu0 %325, %v247
      %v327 = vpop.permute.xlu0 %326
      %329 = vset.pattern.permute.xlu0 1
      %330 = vperm.xlu0 %329, %v248
      %v331 = vpop.permute.xlu0 %330
      %v333 = vlaneseq
      %v334 = vshrl.u32 %v333, 7
      %v335 = vsub.s32 1, %v334
      %v336 = vrot.slane %v240, %v335
      %v337 = vmul.f32 %v303, %v336
      %v338 = vmul.f32 %v307, %v336
      %v339 = vmul.f32 %v311, %v336
      %v340 = vmul.f32 %v315, %v336
      %v341 = vmul.f32 %v319, %v336
      %v342 = vmul.f32 %v323, %v336
      %v343 = vmul.f32 %v327, %v336
      %v344 = vmul.f32 %v331, %v336
      %v345 = vadd.f32 %v293, %v337
      %v346 = vadd.f32 %v294, %v338
      %v347 = vadd.f32 %v295, %v339
      %v348 = vadd.f32 %v296, %v340
      %v349 = vadd.f32 %v297, %v341
      %v350 = vadd.f32 %v298, %v342
      %v351 = vadd.f32 %v299, %v343
      %v352 = vadd.f32 %v300, %v344
      %353 = vset.pattern.permute.xlu0 2
      %354 = vperm.xlu0 %353, %v241
      %v355 = vpop.permute.xlu0 %354
      %357 = vset.pattern.permute.xlu0 2
      %358 = vperm.xlu0 %357, %v242
      %v359 = vpop.permute.xlu0 %358
      %361 = vset.pattern.permute.xlu0 2
      %362 = vperm.xlu0 %361, %v243
      %v363 = vpop.permute.xlu0 %362
      %365 = vset.pattern.permute.xlu0 2
      %366 = vperm.xlu0 %365, %v244
      %v367 = vpop.permute.xlu0 %366
      %369 = vset.pattern.permute.xlu0 2
      %370 = vperm.xlu0 %369, %v245
      %v371 = vpop.permute.xlu0 %370
      %373 = vset.pattern.permute.xlu0 2
      %374 = vperm.xlu0 %373, %v246
      %v375 = vpop.permute.xlu0 %374
      %377 = vset.pattern.permute.xlu0 2
      %378 = vperm.xlu0 %377, %v247
      %v379 = vpop.permute.xlu0 %378
      %381 = vset.pattern.permute.xlu0 2
      %382 = vperm.xlu0 %381, %v248
      %v383 = vpop.permute.xlu0 %382
      %v385 = vlaneseq
      %v386 = vshrl.u32 %v385, 7
      %v387 = vsub.s32 2, %v386
      %v388 = vrot.slane %v240, %v387
      %v389 = vmul.f32 %v355, %v388
      %v390 = vmul.f32 %v359, %v388
      %v391 = vmul.f32 %v363, %v388
      %v392 = vmul.f32 %v367, %v388
      %v393 = vmul.f32 %v371, %v388
      %v394 = vmul.f32 %v375, %v388
      %v395 = vmul.f32 %v379, %v388
      %v396 = vmul.f32 %v383, %v388
      %v397 = vadd.f32 %v345, %v389
      %v398 = vadd.f32 %v346, %v390
      %v399 = vadd.f32 %v347, %v391
      %v400 = vadd.f32 %v348, %v392
      %v401 = vadd.f32 %v349, %v393
      %v402 = vadd.f32 %v350, %v394
      %v403 = vadd.f32 %v351, %v395
      %v404 = vadd.f32 %v352, %v396
      %v405 = vld [vmem:[%s2] sm:$0xff]
      %v406 = vld [vmem:[%s2 + $0x8] sm:$0xff]
      %v407 = vld [vmem:[%s2 + $0x10] sm:$0xff]
      %v408 = vld [vmem:[%s2 + $0x18] sm:$0xff]
      %v409 = vld [vmem:[%s2 + $0x20] sm:$0xff]
      %v410 = vld [vmem:[%s2 + $0x28] sm:$0xff]
      %v411 = vld [vmem:[%s2 + $0x30] sm:$0xff]
      %v412 = vld [vmem:[%s2 + $0x38] sm:$0xff]
      %414 = vset.pattern.permute.xlu0 0
      %415 = vperm.xlu0 %414, %v405
      %v416 = vpop.permute.xlu0 %415
      %419 = vset.pattern.permute.xlu0 0
      %420 = vperm.xlu0 %419, %v406
      %v421 = vpop.permute.xlu0 %420
      %424 = vset.pattern.permute.xlu0 0
      %425 = vperm.xlu0 %424, %v407
      %v426 = vpop.permute.xlu0 %425
      %429 = vset.pattern.permute.xlu0 0
      %430 = vperm.xlu0 %429, %v408
      %v431 = vpop.permute.xlu0 %430
      %434 = vset.pattern.permute.xlu0 0
      %435 = vperm.xlu0 %434, %v409
      %v436 = vpop.permute.xlu0 %435
      %439 = vset.pattern.permute.xlu0 0
      %440 = vperm.xlu0 %439, %v410
      %v441 = vpop.permute.xlu0 %440
      %444 = vset.pattern.permute.xlu0 0
      %445 = vperm.xlu0 %444, %v411
      %v446 = vpop.permute.xlu0 %445
      %449 = vset.pattern.permute.xlu0 0
      %450 = vperm.xlu0 %449, %v412
      %v451 = vpop.permute.xlu0 %450
      %v453 = vadd.f32 %v397, %v416
      %v454 = vadd.f32 %v398, %v421
      %v455 = vadd.f32 %v399, %v426
      %v456 = vadd.f32 %v400, %v431
      %v457 = vadd.f32 %v401, %v436
      %v458 = vadd.f32 %v402, %v441
      %v459 = vadd.f32 %v403, %v446
      %v460 = vadd.f32 %v404, %v451
      %v461 = vmax.f32 %v453, 0.0
      %v462 = vmax.f32 %v454, 0.0
      %v463 = vmax.f32 %v455, 0.0
      %v464 = vmax.f32 %v456, 0.0
      %v465 = vmax.f32 %v457, 0.0
      %v466 = vmax.f32 %v458, 0.0
      %v467 = vmax.f32 %v459, 0.0
      %v468 = vmax.f32 %v460, 0.0
      %v469 = vpack.c.bf16 %v462, %v461
      %v470 = vpack.c.bf16 %v464, %v463
      %v471 = vpack.c.bf16 %v466, %v465
      %v472 = vpack.c.bf16 %v468, %v467
      %v473 = vld [vmem:[%s3] sm:$0xf]
      %v474 = vld [vmem:[%s3 + $0x4] sm:$0xf]
      %v475 = vld [vmem:[%s3 + $0x8] sm:$0xf]
      %v476 = vld [vmem:[%s3 + $0xc] sm:$0xf]
      %v477 = vld [vmem:[%s3 + $0x10] sm:$0xf]
      %v478 = vld [vmem:[%s3 + $0x14] sm:$0xf]
      %v479 = vld [vmem:[%s3 + $0x18] sm:$0xf]
      %v480 = vld [vmem:[%s3 + $0x1c] sm:$0xf]
      %v481 = vld [vmem:[%s3 + $0x20] sm:$0xf]
      %v482 = vld [vmem:[%s3 + $0x24] sm:$0xf]
      %v483 = vld [vmem:[%s3 + $0x28] sm:$0xf]
      %v484 = vld [vmem:[%s3 + $0x2c] sm:$0xf]
      %v485 = vld [vmem:[%s3 + $0x30] sm:$0xf]
      %v486 = vld [vmem:[%s3 + $0x34] sm:$0xf]
      %v487 = vld [vmem:[%s3 + $0x38] sm:$0xf]
      %v488 = vld [vmem:[%s3 + $0x3c] sm:$0xf]
      %v505 = vunpack.c.l.b16 %v473
      %v506 = vunpack.c.l.b16 %v474
      %v507 = vunpack.c.l.b16 %v475
      %v508 = vunpack.c.l.b16 %v476
      %v509 = vunpack.c.l.b16 %v477
      %v510 = vunpack.c.l.b16 %v478
      %v511 = vunpack.c.l.b16 %v479
      %v512 = vunpack.c.l.b16 %v480
      %v513 = vunpack.c.l.b16 %v481
      %v514 = vunpack.c.l.b16 %v482
      %v515 = vunpack.c.l.b16 %v483
      %v516 = vunpack.c.l.b16 %v484
      %v517 = vunpack.c.l.b16 %v485
      %v518 = vunpack.c.l.b16 %v486
      %v519 = vunpack.c.l.b16 %v487
      %v520 = vunpack.c.l.b16 %v488
      %v521 = vpack.c.b16 %v506, %v505
      %v522 = vpack.c.b16 %v508, %v507
      %v523 = vpack.c.b16 %v510, %v509
      %v524 = vpack.c.b16 %v512, %v511
      %v525 = vpack.c.b16 %v514, %v513
      %v526 = vpack.c.b16 %v516, %v515
      %v527 = vpack.c.b16 %v518, %v517
      %v528 = vpack.c.b16 %v520, %v519
      %vm529 = vcmask 523264
      %v531 = vsel %vm529, %v521, 0
      %v534 = vsel %vm529, %v522, 0
      %v537 = vsel %vm529, %v523, 0
      %v540 = vsel %vm529, %v524, 0
      %v543 = vsel %vm529, %v525, 0
      %v546 = vsel %vm529, %v526, 0
      %v549 = vsel %vm529, %v527, 0
      %v552 = vsel %vm529, %v528, 0
      %554 = vmatprep.subr.bf16.mxu0 0
      %555 = vmatpush1.bf16.msra.mxu0 %v469
      %556 = vmatprep.subr.bf16.mxu0 0
      %557 = vmatpush1.bf16.msra.mxu0 %v470
      %558 = vmatprep.subr.bf16.mxu0 0
      %559 = vmatpush1.bf16.msra.mxu0 %v471
      %560 = vmatprep.subr.bf16.mxu0 0
      %561 = vmatpush1.bf16.msra.mxu0 %v472
      %562 = vmatprep.subr.bf16.mxu0 0
      %563 = vmatpush1.bf16.msra.mxu0 0
      %564 = vmatprep.subr.bf16.mxu0 0
      %565 = vmatpush1.bf16.msra.mxu0 0
      %566 = vmatprep.subr.bf16.mxu0 0
      %567 = vmatpush1.bf16.msra.mxu0 0
      %568 = vmatprep.subr.bf16.mxu0 0
      %569 = vmatpush1.bf16.msra.mxu0 0
      %570 = vmatprep.subr.bf16.mxu0 0
      %571 = vmatpush1.bf16.msra.mxu0 0
      %572 = vmatprep.subr.bf16.mxu0 0
      %573 = vmatpush1.bf16.msra.mxu0 0
      %574 = vmatprep.subr.bf16.mxu0 0
      %575 = vmatpush1.bf16.msra.mxu0 0
      %576 = vmatprep.subr.bf16.mxu0 0
      %577 = vmatpush1.bf16.msra.mxu0 0
      %578 = vmatprep.subr.bf16.mxu0 0
      %579 = vmatpush1.bf16.msra.mxu0 0
      %580 = vmatprep.subr.bf16.mxu0 0
      %581 = vmatpush1.bf16.msra.mxu0 0
      %582 = vmatprep.subr.bf16.mxu0 0
      %583 = vmatpush1.bf16.msra.mxu0 0
      %584 = vmatprep.subr.bf16.mxu0 0
      %585 = vmatpush1.bf16.msra.mxu0 0
      %586 = vmatprep.mubr.bf16.mxu0 0
      %587 = vmatmul.mubr.bf16.gmra.mrb[0].mxu0 %v531
      %v588 = vpop.f32.mrb[0].mxu0
      %v589 = vadd.f32 0.0, %v588
      %v590 = vpop.f32.mrb[0].mxu0
      %v591 = vpop.f32.mrb[0].mxu0
      %v592 = vadd.f32 0.0, %v591
      %v593 = vpop.f32.mrb[0].mxu0
      %594 = vmatprep.mubr.bf16.mxu0 0
      %595 = vmatmul.mubr.bf16.gmra.mrb[0].mxu0 %v534
      %v596 = vpop.f32.mrb[0].mxu0
      %v597 = vadd.f32 0.0, %v596
      %v598 = vpop.f32.mrb[0].mxu0
      %v599 = vpop.f32.mrb[0].mxu0
      %v600 = vadd.f32 0.0, %v599
      %v601 = vpop.f32.mrb[0].mxu0
      %602 = vmatprep.mubr.bf16.mxu0 0
      %603 = vmatmul.mubr.bf16.gmra.mrb[0].mxu0 %v537
      %v604 = vpop.f32.mrb[0].mxu0
      %v605 = vadd.f32 0.0, %v604
      %v606 = vpop.f32.mrb[0].mxu0
      %v607 = vpop.f32.mrb[0].mxu0
      %v608 = vadd.f32 0.0, %v607
      %v609 = vpop.f32.mrb[0].mxu0
      %610 = vmatprep.mubr.bf16.mxu0 0
      %611 = vmatmul.mubr.bf16.gmra.mrb[0].mxu0 %v540
      %v612 = vpop.f32.mrb[0].mxu0
      %v613 = vadd.f32 0.0, %v612
      %v614 = vpop.f32.mrb[0].mxu0
      %v615 = vpop.f32.mrb[0].mxu0
      %v616 = vadd.f32 0.0, %v615
      %v617 = vpop.f32.mrb[0].mxu0
      %618 = vmatprep.mubr.bf16.mxu0 0
      %619 = vmatmul.mubr.bf16.gmra.mrb[0].mxu0 %v543
      %v620 = vpop.f32.mrb[0].mxu0
      %v621 = vadd.f32 0.0, %v620
      %v622 = vpop.f32.mrb[0].mxu0
      %v623 = vpop.f32.mrb[0].mxu0
      %v624 = vadd.f32 0.0, %v623
      %v625 = vpop.f32.mrb[0].mxu0
      %626 = vmatprep.mubr.bf16.mxu0 0
      %627 = vmatmul.mubr.bf16.gmra.mrb[0].mxu0 %v546
      %v628 = vpop.f32.mrb[0].mxu0
      %v629 = vadd.f32 0.0, %v628
      %v630 = vpop.f32.mrb[0].mxu0
      %v631 = vpop.f32.mrb[0].mxu0
      %v632 = vadd.f32 0.0, %v631
      %v633 = vpop.f32.mrb[0].mxu0
      %634 = vmatprep.mubr.bf16.mxu0 0
      %635 = vmatmul.mubr.bf16.gmra.mrb[0].mxu0 %v549
      %v636 = vpop.f32.mrb[0].mxu0
      %v637 = vadd.f32 0.0, %v636
      %v638 = vpop.f32.mrb[0].mxu0
      %v639 = vpop.f32.mrb[0].mxu0
      %v640 = vadd.f32 0.0, %v639
      %v641 = vpop.f32.mrb[0].mxu0
      %642 = vmatprep.mubr.bf16.mxu0 0
      %643 = vmatmul.mubr.bf16.gmra.mrb[0].mxu0 %v552
      %v644 = vpop.f32.mrb[0].mxu0
      %v645 = vadd.f32 0.0, %v644
      %v646 = vpop.f32.mrb[0].mxu0
      %v647 = vpop.f32.mrb[0].mxu0
      %v648 = vadd.f32 0.0, %v647
      %v649 = vpop.f32.mrb[0].mxu0
      %650 = vdwg.mxu0
      %p651 = scmp.ne.s32.totalorder %s20, 0
      // Predicated region
      $region41: #{tpu_custom_call.1} parent=35 // pred_check
        %p652 = pneg %p651
      $region42: #{tpu_custom_call.1} parent=35 // pred_check_branch
        %654 = sbr.rel (%p652) target = $region44
      $region43: #{tpu_custom_call.1} parent=35 // pred_region
        %v655 = vld [vmem:[#allocation2] sm:$0xff]
        %v656 = vld [vmem:[#allocation2 + $0x8] sm:$0xff]
        %v657 = vld [vmem:[#allocation2 + $0x10] sm:$0xff]
        %v658 = vld [vmem:[#allocation2 + $0x18] sm:$0xff]
        %v659 = vld [vmem:[#allocation2 + $0x20] sm:$0xff]
        %v660 = vld [vmem:[#allocation2 + $0x28] sm:$0xff]
        %v661 = vld [vmem:[#allocation2 + $0x30] sm:$0xff]
        %v662 = vld [vmem:[#allocation2 + $0x38] sm:$0xff]
        %v663 = vld [vmem:[#allocation2 + $0x40] sm:$0xff]
        %v664 = vld [vmem:[#allocation2 + $0x48] sm:$0xff]
        %v665 = vld [vmem:[#allocation2 + $0x50] sm:$0xff]
        %v666 = vld [vmem:[#allocation2 + $0x58] sm:$0xff]
        %v667 = vld [vmem:[#allocation2 + $0x60] sm:$0xff]
        %v668 = vld [vmem:[#allocation2 + $0x68] sm:$0xff]
        %v669 = vld [vmem:[#allocation2 + $0x70] sm:$0xff]
        %v670 = vld [vmem:[#allocation2 + $0x78] sm:$0xff]
        %671 = vmax.xlane.f32.xlu0 %v589
        %v672 = vpop.xlane.xlu0 %671
        %673 = vmax.xlane.f32.xlu0 %v592
        %v674 = vpop.xlane.xlu0 %673
        %675 = vmax.xlane.f32.xlu0 %v597
        %v676 = vpop.xlane.xlu0 %675
        %677 = vmax.xlane.f32.xlu0 %v600
        %v678 = vpop.xlane.xlu0 %677
        %679 = vmax.xlane.f32.xlu0 %v605
        %v680 = vpop.xlane.xlu0 %679
        %681 = vmax.xlane.f32.xlu0 %v608
        %v682 = vpop.xlane.xlu0 %681
        %683 = vmax.xlane.f32.xlu0 %v613
        %v684 = vpop.xlane.xlu0 %683
        %685 = vmax.xlane.f32.xlu0 %v616
        %v686 = vpop.xlane.xlu0 %685
        %687 = vmax.xlane.f32.xlu0 %v621
        %v688 = vpop.xlane.xlu0 %687
        %689 = vmax.xlane.f32.xlu0 %v624
        %v690 = vpop.xlane.xlu0 %689
        %691 = vmax.xlane.f32.xlu0 %v629
        %v692 = vpop.xlane.xlu0 %691
        %693 = vmax.xlane.f32.xlu0 %v632
        %v694 = vpop.xlane.xlu0 %693
        %695 = vmax.xlane.f32.xlu0 %v637
        %v696 = vpop.xlane.xlu0 %695
        %697 = vmax.xlane.f32.xlu0 %v640
        %v698 = vpop.xlane.xlu0 %697
        %699 = vmax.xlane.f32.xlu0 %v645
        %v700 = vpop.xlane.xlu0 %699
        %701 = vmax.xlane.f32.xlu0 %v648
        %v702 = vpop.xlane.xlu0 %701
        %v703 = vmax.f32 %v655, %v672
        %v704 = vmax.f32 %v656, %v674
        %v705 = vmax.f32 %v657, %v676
        %v706 = vmax.f32 %v658, %v678
        %v707 = vmax.f32 %v659, %v680
        %v708 = vmax.f32 %v660, %v682
        %v709 = vmax.f32 %v661, %v684
        %v710 = vmax.f32 %v662, %v686
        %v711 = vmax.f32 %v663, %v688
        %v712 = vmax.f32 %v664, %v690
        %v713 = vmax.f32 %v665, %v692
        %v714 = vmax.f32 %v666, %v694
        %v715 = vmax.f32 %v667, %v696
        %v716 = vmax.f32 %v668, %v698
        %v717 = vmax.f32 %v669, %v700
        %v718 = vmax.f32 %v670, %v702
        %vm719 = vcmask 7168
        %720 = vst.msk [vmem:[#allocation2] sm:$0xff] %vm719, %v703
        %721 = vst.msk [vmem:[#allocation2 + $0x8] sm:$0xff] %vm719, %v704
        %722 = vst.msk [vmem:[#allocation2 + $0x10] sm:$0xff] %vm719, %v705
        %723 = vst.msk [vmem:[#allocation2 + $0x18] sm:$0xff] %vm719, %v706
        %724 = vst.msk [vmem:[#allocation2 + $0x20] sm:$0xff] %vm719, %v707
        %725 = vst.msk [vmem:[#allocation2 + $0x28] sm:$0xff] %vm719, %v708
        %726 = vst.msk [vmem:[#allocation2 + $0x30] sm:$0xff] %vm719, %v709
        %727 = vst.msk [vmem:[#allocation2 + $0x38] sm:$0xff] %vm719, %v710
        %728 = vst.msk [vmem:[#allocation2 + $0x40] sm:$0xff] %vm719, %v711
        %729 = vst.msk [vmem:[#allocation2 + $0x48] sm:$0xff] %vm719, %v712
        %730 = vst.msk [vmem:[#allocation2 + $0x50] sm:$0xff] %vm719, %v713
        %731 = vst.msk [vmem:[#allocation2 + $0x58] sm:$0xff] %vm719, %v714
        %732 = vst.msk [vmem:[#allocation2 + $0x60] sm:$0xff] %vm719, %v715
        %733 = vst.msk [vmem:[#allocation2 + $0x68] sm:$0xff] %vm719, %v716
        %734 = vst.msk [vmem:[#allocation2 + $0x70] sm:$0xff] %vm719, %v717
        %735 = vst.msk [vmem:[#allocation2 + $0x78] sm:$0xff] %vm719, %v718
      $region44: #{tpu_custom_call.1} parent=35 // pred_fallthru
        _
      // Predicated region
      $region45: #{tpu_custom_call.1} parent=35 // pred_check
        %p736 = pneg %p219
      $region46: #{tpu_custom_call.1} parent=35 // pred_check_branch
        %738 = sbr.rel (%p736) target = $region48
      $region47: #{tpu_custom_call.1} parent=35 // pred_region
        %v739 = vlaneseq
        %v740 = vand.u32 %v739, 127
        %s741 = smul.u32 %s20, 128
        %s742 = ssub.s32 16, %s741
        %v743 = vstv %s742
        %vm744 = vcmp.lt.s32.totalorder %v740, %v743
        %v745 = vsel %vm744, 1, 0
        %vm746 = vcmp.eq.s32.totalorder %v745, 1
        %v747 = vsel %vm746, %v589, -inf
        %v748 = vsel %vm746, %v592, -inf
        %v749 = vsel %vm746, %v597, -inf
        %v750 = vsel %vm746, %v600, -inf
        %v751 = vsel %vm746, %v605, -inf
        %v752 = vsel %vm746, %v608, -inf
        %v753 = vsel %vm746, %v613, -inf
        %v754 = vsel %vm746, %v616, -inf
        %v755 = vsel %vm746, %v621, -inf
        %v756 = vsel %vm746, %v624, -inf
        %v757 = vsel %vm746, %v629, -inf
        %v758 = vsel %vm746, %v632, -inf
        %v759 = vsel %vm746, %v637, -inf
        %v760 = vsel %vm746, %v640, -inf
        %v761 = vsel %vm746, %v645, -inf
        %v762 = vsel %vm746, %v648, -inf
        %v763 = vld [vmem:[#allocation2] sm:$0xff]
        %v764 = vld [vmem:[#allocation2 + $0x8] sm:$0xff]
        %v765 = vld [vmem:[#allocation2 + $0x10] sm:$0xff]
        %v766 = vld [vmem:[#allocation2 + $0x18] sm:$0xff]
        %v767 = vld [vmem:[#allocation2 + $0x20] sm:$0xff]
        %v768 = vld [vmem:[#allocation2 + $0x28] sm:$0xff]
        %v769 = vld [vmem:[#allocation2 + $0x30] sm:$0xff]
        %v770 = vld [vmem:[#allocation2 + $0x38] sm:$0xff]
        %v771 = vld [vmem:[#allocation2 + $0x40] sm:$0xff]
        %v772 = vld [vmem:[#allocation2 + $0x48] sm:$0xff]
        %v773 = vld [vmem:[#allocation2 + $0x50] sm:$0xff]
        %v774 = vld [vmem:[#allocation2 + $0x58] sm:$0xff]
        %v775 = vld [vmem:[#allocation2 + $0x60] sm:$0xff]
        %v776 = vld [vmem:[#allocation2 + $0x68] sm:$0xff]
        %v777 = vld [vmem:[#allocation2 + $0x70] sm:$0xff]
        %v778 = vld [vmem:[#allocation2 + $0x78] sm:$0xff]
        %779 = vmax.xlane.f32.xlu0 %v747
        %v780 = vpop.xlane.xlu0 %779
        %781 = vmax.xlane.f32.xlu0 %v748
        %v782 = vpop.xlane.xlu0 %781
        %783 = vmax.xlane.f32.xlu0 %v749
        %v784 = vpop.xlane.xlu0 %783
        %785 = vmax.xlane.f32.xlu0 %v750
        %v786 = vpop.xlane.xlu0 %785
        %787 = vmax.xlane.f32.xlu0 %v751
        %v788 = vpop.xlane.xlu0 %787
        %789 = vmax.xlane.f32.xlu0 %v752
        %v790 = vpop.xlane.xlu0 %789
        %791 = vmax.xlane.f32.xlu0 %v753
        %v792 = vpop.xlane.xlu0 %791
        %793 = vmax.xlane.f32.xlu0 %v754
        %v794 = vpop.xlane.xlu0 %793
        %795 = vmax.xlane.f32.xlu0 %v755
        %v796 = vpop.xlane.xlu0 %795
        %797 = vmax.xlane.f32.xlu0 %v756
        %v798 = vpop.xlane.xlu0 %797
        %799 = vmax.xlane.f32.xlu0 %v757
        %v800 = vpop.xlane.xlu0 %799
        %801 = vmax.xlane.f32.xlu0 %v758
        %v802 = vpop.xlane.xlu0 %801
        %803 = vmax.xlane.f32.xlu0 %v759
        %v804 = vpop.xlane.xlu0 %803
        %805 = vmax.xlane.f32.xlu0 %v760
        %v806 = vpop.xlane.xlu0 %805
        %807 = vmax.xlane.f32.xlu0 %v761
        %v808 = vpop.xlane.xlu0 %807
        %809 = vmax.xlane.f32.xlu0 %v762
        %v810 = vpop.xlane.xlu0 %809
        %v811 = vmax.f32 %v763, %v780
        %v812 = vmax.f32 %v764, %v782
        %v813 = vmax.f32 %v765, %v784
        %v814 = vmax.f32 %v766, %v786
        %v815 = vmax.f32 %v767, %v788
        %v816 = vmax.f32 %v768, %v790
        %v817 = vmax.f32 %v769, %v792
        %v818 = vmax.f32 %v770, %v794
        %v819 = vmax.f32 %v771, %v796
        %v820 = vmax.f32 %v772, %v798
        %v821 = vmax.f32 %v773, %v800
        %v822 = vmax.f32 %v774, %v802
        %v823 = vmax.f32 %v775, %v804
        %v824 = vmax.f32 %v776, %v806
        %v825 = vmax.f32 %v777, %v808
        %v826 = vmax.f32 %v778, %v810
        %vm827 = vcmask 7168
        %828 = vst.msk [vmem:[#allocation2] sm:$0xff] %vm827, %v811
        %829 = vst.msk [vmem:[#allocation2 + $0x8] sm:$0xff] %vm827, %v812
        %830 = vst.msk [vmem:[#allocation2 + $0x10] sm:$0xff] %vm827, %v813
        %831 = vst.msk [vmem:[#allocation2 + $0x18] sm:$0xff] %vm827, %v814
        %832 = vst.msk [vmem:[#allocation2 + $0x20] sm:$0xff] %vm827, %v815
        %833 = vst.msk [vmem:[#allocation2 + $0x28] sm:$0xff] %vm827, %v816
        %834 = vst.msk [vmem:[#allocation2 + $0x30] sm:$0xff] %vm827, %v817
        %835 = vst.msk [vmem:[#allocation2 + $0x38] sm:$0xff] %vm827, %v818
        %836 = vst.msk [vmem:[#allocation2 + $0x40] sm:$0xff] %vm827, %v819
        %837 = vst.msk [vmem:[#allocation2 + $0x48] sm:$0xff] %vm827, %v820
        %838 = vst.msk [vmem:[#allocation2 + $0x50] sm:$0xff] %vm827, %v821
        %839 = vst.msk [vmem:[#allocation2 + $0x58] sm:$0xff] %vm827, %v822
        %840 = vst.msk [vmem:[#allocation2 + $0x60] sm:$0xff] %vm827, %v823
        %841 = vst.msk [vmem:[#allocation2 + $0x68] sm:$0xff] %vm827, %v824
        %842 = vst.msk [vmem:[#allocation2 + $0x70] sm:$0xff] %vm827, %v825
        %843 = vst.msk [vmem:[#allocation2 + $0x78] sm:$0xff] %vm827, %v826
        %v844 = vld [vmem:[#allocation2] sm:$0xff]
        %v845 = vld [vmem:[#allocation2 + $0x8] sm:$0xff]
        %v846 = vld [vmem:[#allocation2 + $0x10] sm:$0xff]
        %v847 = vld [vmem:[#allocation2 + $0x18] sm:$0xff]
        %v848 = vld [vmem:[#allocation2 + $0x20] sm:$0xff]
        %v849 = vld [vmem:[#allocation2 + $0x28] sm:$0xff]
        %v850 = vld [vmem:[#allocation2 + $0x30] sm:$0xff]
        %v851 = vld [vmem:[#allocation2 + $0x38] sm:$0xff]
        %v852 = vld [vmem:[#allocation2 + $0x40] sm:$0xff]
        %v853 = vld [vmem:[#allocation2 + $0x48] sm:$0xff]
        %v854 = vld [vmem:[#allocation2 + $0x50] sm:$0xff]
        %v855 = vld [vmem:[#allocation2 + $0x58] sm:$0xff]
        %v856 = vld [vmem:[#allocation2 + $0x60] sm:$0xff]
        %v857 = vld [vmem:[#allocation2 + $0x68] sm:$0xff]
        %v858 = vld [vmem:[#allocation2 + $0x70] sm:$0xff]
        %v859 = vld [vmem:[#allocation2 + $0x78] sm:$0xff]
        %860 = vst.msk [vmem:[%s217] sm:$0xff] %vm827, %v844
        %861 = vst.msk [vmem:[%s217 + $0x8] sm:$0xff] %vm827, %v845
        %862 = vst.msk [vmem:[%s217 + $0x10] sm:$0xff] %vm827, %v846
        %863 = vst.msk [vmem:[%s217 + $0x18] sm:$0xff] %vm827, %v847
        %864 = vst.msk [vmem:[%s217 + $0x20] sm:$0xff] %vm827, %v848
        %865 = vst.msk [vmem:[%s217 + $0x28] sm:$0xff] %vm827, %v849
        %866 = vst.msk [vmem:[%s217 + $0x30] sm:$0xff] %vm827, %v850
        %867 = vst.msk [vmem:[%s217 + $0x38] sm:$0xff] %vm827, %v851
        %868 = vst.msk [vmem:[%s217 + $0x40] sm:$0xff] %vm827, %v852
        %869 = vst.msk [vmem:[%s217 + $0x48] sm:$0xff] %vm827, %v853
        %870 = vst.msk [vmem:[%s217 + $0x50] sm:$0xff] %vm827, %v854
        %871 = vst.msk [vmem:[%s217 + $0x58] sm:$0xff] %vm827, %v855
        %872 = vst.msk [vmem:[%s217 + $0x60] sm:$0xff] %vm827, %v856
        %873 = vst.msk [vmem:[%s217 + $0x68] sm:$0xff] %vm827, %v857
        %874 = vst.msk [vmem:[%s217 + $0x70] sm:$0xff] %vm827, %v858
        %875 = vst.msk [vmem:[%s217 + $0x78] sm:$0xff] %vm827, %v859
      $region48: #{tpu_custom_call.1} parent=35 // pred_fallthru
        _
      %p876 = scmp.lt.s32.totalorder %s19, 1
      %s877 = scalar_select %p876, %s19, 1
      %s878 = smul.addr %s877, 16
      %s879 = smul.addr %s878, 8
      %s880 = scalar_lea.vmem %s4, %s879
      // Predicated region
      $region49: #{tpu_custom_call.1} parent=35 // pred_check
        %p881 = pneg %p136
      $region50: #{tpu_custom_call.1} parent=35 // pred_check_branch
        %883 = sbr.rel (%p881) target = $region52
      $region51: #{tpu_custom_call.1} parent=35 // pred_region
        _
      $region52: #{tpu_custom_call.1} parent=35 // pred_fallthru
        _
    $region36: #{tpu_custom_call.1} parent=5 // pred_fallthru
      _
    %p884 = scmp.le.s32.totalorder 2, %s10
    // Predicated region
    $region53: #{tpu_custom_call.1} parent=5 // pred_check
      %p885 = pneg %p884
    $region54: #{tpu_custom_call.1} parent=5 // pred_check_branch
      %887 = sbr.rel (%p885) target = $region56
    $region55: #{tpu_custom_call.1} parent=5 // pred_region
      %s888 = ssub.s32 %s10, 2
      // Predicated region
      $region57: #{tpu_custom_call.1} parent=55 // pred_check
        %p889 = pneg %p142
      $region58: #{tpu_custom_call.1} parent=55 // pred_check_branch
        %891 = sbr.rel (%p889) target = $region60
      $region59: #{tpu_custom_call.1} parent=55 // pred_region
        %p892 = scmp.lt.s32.totalorder %s21, 1
        %s893 = scalar_select %p892, %s21, 1
        %s894 = smul.addr %s893, 16
        %s895 = smul.addr %s894, 8
        %s896 = scalar_lea.vmem %s4, %s895
      $region60: #{tpu_custom_call.1} parent=55 // pred_fallthru
        _
    $region56: #{tpu_custom_call.1} parent=5 // pred_fallthru
      _
  $region6: #{tpu_custom_call.1} parent=0 // loop_footer
    %s14 = sadd.s32 1, %s10
  $region7: #{tpu_custom_call.1} parent=0 // loop_footer_branch
    %9 = sbr.rel target = $region3
  $region8: #{tpu_custom_call.1} parent=0 // loop_exit
    _

</llo_original>
